<compile_context>
chip_gen: v7x
topology: tpu7x:2x2x1
jax: 0.10.0
libtpu: 0.0.40
codegen_flags: <defaults>
</compile_context>

<pallas_src>
import functools

import jax
import jax.numpy as jnp
from jax import lax
from jax.experimental import pallas as pl
from jax.experimental.pallas import tpu as pltpu


_MIN_GRID_STEPS = 8   # keep >= ~8 grid steps so v7x megacore + pipelining have depth


def _round_up(x, m):
    return ((x + m - 1) // m) * m


def _row_align(itemsize):
    # native sublane packing: f32 -> (8,128), bf16 -> (16,128), int8/fp8 -> (32,128)
    return {4: 8, 2: 16, 1: 32}.get(int(itemsize), 8)


def _vmem_capacity_bytes():
    """Physical VMEM of the current chip (conservative 64 MiB fallback)."""
    try:
        info = pltpu.get_tpu_info()
        cap = getattr(info, "vmem_capacity_bytes", None)
        if cap:
            return int(cap)
    except Exception:
        pass
    return 64 * 1024 * 1024


def _vmem_budgets():
    """(vmem_limit_bytes, tile_budget_bytes) per TPU generation."""
    cap = _vmem_capacity_bytes()
    if cap >= 100 * 1024 * 1024:          # v5e / v6e: 128 MiB physical VMEM
        return 64 * 1024 * 1024, 48 * 1024 * 1024
    # v7x: only 64 MiB per TensorCore -> leave real headroom
    return 32 * 1024 * 1024, 24 * 1024 * 1024


def _pick_tile_n(n, c, itemsize, budget_bytes):
    """Rows per grid step: as big as fits the VMEM budget, sublane-aligned,
    but small enough to give the grid >= ~_MIN_GRID_STEPS steps."""
    align = _row_align(itemsize)
    c_pad = _round_up(c, 128)                      # class axis pads to 128 lanes in VMEM
    # Per-row VMEM bytes:
    #   2x double-buffered native-dtype logits block            : 2 * c_pad * itemsize
    #   ~3 (tile_n, c_pad) f32 temporaries (upcast, exp, select): 3 * c_pad * 4
    #   2 buffers each for targets / alpha_t / output columns   : 6 * 128 * 4
    per_row = 2 * c_pad * itemsize + 3 * c_pad * 4 + 6 * 128 * 4
    t = budget_bytes // per_row
    t = max(align, (t // align) * align)
    # Cap so the grid has at least ~_MIN_GRID_STEPS steps (no-op for small n).
    target = -(-n // _MIN_GRID_STEPS)              # cdiv(n, steps)
    target = max(align, _round_up(target, align))
    return min(t, target)


def _focal_weight(u, gamma):
    """(1 - pt) ** gamma.  Integer gamma stays on the VPU (4 ALU slots, slack);
    float pow would add log+exp load to the single EUP already doing the big exp."""
    if isinstance(gamma, int) or (isinstance(gamma, float) and float(gamma).is_integer()):
        g = int(gamma)
        if g == 0:
            return jnp.ones_like(u)
        if g == 1:
            return u
        if g == 2:
            return u * u
        return lax.integer_pow(u, g)
    return u ** gamma  # non-integer gamma: genuine pow (u is clamped >= 0, no NaN)


def _focal_core(logits, tgt, gamma):
    """Per-row focal loss for one (TILE_N, C) block -> (TILE_N, 1) column."""
    x = logits.astype(jnp.float32)          # upcast in-VMEM only; DMA was native dtype
    n, c = x.shape
    # numerically stable log-sum-exp over the class (lane) axis
    m = jnp.max(x, axis=-1, keepdims=True)
    lse = m + jnp.log(jnp.sum(jnp.exp(x - m), axis=-1, keepdims=True))
    # gather the target-class logit with an iota/one-hot mask (no dyn gather on TPU).
    # NOTE: out-of-range / negative targets give an all-false mask (tgt_logit = 0)
    # instead of erroring like torch.gather would.
    col = lax.broadcasted_iota(jnp.int32, (n, c), 1)
    onehot = col == tgt                                      # (TILE_N, C) bool
    tgt_logit = jnp.sum(jnp.where(onehot, x, 0.0), axis=-1, keepdims=True)
    bce = jnp.maximum(lse - tgt_logit, 0.0)                  # CE >= 0; clamp rounding noise
    pt = jnp.exp(-bce)
    u = jnp.maximum(1.0 - pt, 0.0)                           # keep pow argument >= 0
    return _focal_weight(u, gamma) * bce


def _focal_loss_kernel(x_ref, t_ref, o_ref, *, gamma):
    o_ref[...] = _focal_core(x_ref[...], t_ref[...], gamma)


def _focal_loss_alpha_kernel(x_ref, t_ref, a_ref, o_ref, *, gamma):
    # alpha was gathered in the wrapper; here it's just a per-row column scale.
    o_ref[...] = a_ref[...].astype(jnp.float32) * _focal_core(x_ref[...], t_ref[...], gamma)


def focal_loss(inputs, targets, *, gamma=2, alpha=None, reduction="none", tile_n=None):
    """JAX/Pallas equivalent of FocalLoss.forward(inputs, targets).

    inputs:  (N, C) float logits (f32 or bf16 — DMA'd in native dtype)
    targets: (N,)   integer class indices
    """
    n, c = inputs.shape
    itemsize = jnp.dtype(inputs.dtype).itemsize
    vmem_limit, tile_budget = _vmem_budgets()
    if tile_n is None:
        tile_n = _pick_tile_n(n, c, itemsize, tile_budget)

    tgt = targets.astype(jnp.int32)
    t2d = tgt.reshape(n, 1)

    # Ragged last block (when N % tile_n != 0) is handled by Pallas' masked
    # read/writeback — no jnp.pad full copy of the logits in HBM.
    grid = (pl.cdiv(n, tile_n),)
    compiler_params = pltpu.CompilerParams(
        dimension_semantics=("parallel",),          # rows are independent -> megacore
        vmem_limit_bytes=vmem_limit,
    )
    cost_estimate = pl.CostEstimate(
        flops=int(6 * n * c),
        transcendentals=int(n * c + 3 * n),
        bytes_accessed=int(n * c * itemsize + 16 * n),
    )
    out_shape = jax.ShapeDtypeStruct((n, 1), jnp.float32)
    x_spec = pl.BlockSpec((tile_n, c), lambda i: (i, 0))
    t_spec = pl.BlockSpec((tile_n, 1), lambda i: (i, 0))
    o_spec = pl.BlockSpec((tile_n, 1), lambda i: (i, 0))

    # TODO(synk): for vocab-scale C, add a second ("arbitrary") grid axis over classes
    # with an online LSE carried in VMEM scratch; a single C block is fine for
    # classification-sized C.

    if alpha is None:
        kernel = functools.partial(_focal_loss_kernel, gamma=gamma)
        loss = pl.pallas_call(
            kernel,
            out_shape=out_shape,
            grid=grid,
            in_specs=[x_spec, t_spec],
            out_specs=o_spec,
            compiler_params=compiler_params,
            cost_estimate=cost_estimate,
        )(inputs, t2d)
    else:
        # alpha.gather(0, targets) as a tiny XLA take in the wrapper; the kernel
        # only streams the resulting (N, 1) column (saves one (tile_n, C) select
        # and one cross-lane reduction per block).
        alpha_t = jnp.asarray(alpha, jnp.float32)[tgt].reshape(n, 1)
        a_spec = pl.BlockSpec((tile_n, 1), lambda i: (i, 0))
        kernel = functools.partial(_focal_loss_alpha_kernel, gamma=gamma)
        loss = pl.pallas_call(
            kernel,
            out_shape=out_shape,
            grid=grid,
            in_specs=[x_spec, t_spec, a_spec],
            out_specs=o_spec,
            compiler_params=compiler_params,
            cost_estimate=cost_estimate,
        )(inputs, t2d, alpha_t)

    loss = loss[:, 0]                                # (N,)
    if reduction == "mean":
        return loss.mean()                           # tiny (N,) reduce; stays in XLA
    elif reduction == "sum":
        return loss.sum()
    return loss                                      # reduction='none' (module default)


def _focal_loss_ref(inputs, targets, *, gamma=2, alpha=None, reduction="none"):
    """Pure-JAX reference (mirrors the PyTorch module) for a sanity check."""
    logp = jax.nn.log_softmax(inputs.astype(jnp.float32), axis=-1)
    bce = -jnp.take_along_axis(logp, targets.astype(jnp.int32)[:, None], axis=-1)[:, 0]
    pt = jnp.exp(-bce)
    floss = (1.0 - pt) ** gamma * bce
    if alpha is not None:
        floss = jnp.asarray(alpha, jnp.float32)[targets.astype(jnp.int32)] * floss
    if reduction == "mean":
        return floss.mean()
    if reduction == "sum":
        return floss.sum()
    return floss


if __name__ == "__main__":
    key = jax.random.PRNGKey(0)
    k1, k2 = jax.random.split(key)

    N, C = 8, 32                                   # small (batch, num_classes)
    inputs = jax.random.normal(k1, (N, C), dtype=jnp.float32)
    targets = jax.random.randint(k2, (N,), 0, C, dtype=jnp.int32)

    # default config: gamma=2, alpha=None, reduction='none'
    out = jax.block_until_ready(focal_loss(inputs, targets, gamma=2, reduction="none"))
    ref = _focal_loss_ref(inputs, targets, gamma=2, reduction="none")
    assert out.shape == (N,)
    assert jnp.allclose(out, ref, rtol=1e-5, atol=1e-5)

    # alpha branch (deterministic per-class weights, wrapper-side gather)
    alpha = jnp.linspace(0.25, 1.0, C, dtype=jnp.float32)
    out_a = jax.block_until_ready(focal_loss(inputs, targets, gamma=2, alpha=alpha))
    ref_a = _focal_loss_ref(inputs, targets, gamma=2, alpha=alpha)
    assert jnp.allclose(out_a, ref_a, rtol=1e-5, atol=1e-5)

    # multi-tile grid + ragged last block (no pad copy) + mean reduction
    k3, k4 = jax.random.split(k2)
    N2 = 100
    inputs2 = jax.random.normal(k3, (N2, C), dtype=jnp.float32)
    targets2 = jax.random.randint(k4, (N2,), 0, C, dtype=jnp.int32)
    out2 = jax.block_until_ready(
        focal_loss(inputs2, targets2, gamma=2, reduction="mean", tile_n=32))
    ref2 = _focal_loss_ref(inputs2, targets2, gamma=2, reduction="mean")
    assert jnp.allclose(out2, ref2, rtol=1e-5, atol=1e-5)

    print("KERNEL_OK")
</pallas_src>

<mosaic_0001>
module attributes {stable_mosaic.version = 11 : i64} {
  func.func @_focal_loss_kernel(%arg0: i32, %arg1: memref<8x32xf32, #tpu.memory_space<vmem>>, %arg2: memref<8x1xi32, #tpu.memory_space<vmem>>, %arg3: memref<8x1xf32, #tpu.memory_space<vmem>>) attributes {dimension_semantics = [#tpu.dimension_semantics<parallel>], iteration_bounds = array<i64: 1>, scalar_prefetch = 0 : i64, scratch_operands = 0 : i64, tpu.core_type = #tpu.core_type<tc>, window_params = [{transform_indices = @transform_0, window_bounds = array<i64: 8, 32>}, {transform_indices = @transform_1, window_bounds = array<i64: 8, 1>}, {transform_indices = @transform_2, window_bounds = array<i64: 8, 1>}]} {
    %c0 = arith.constant 0 : index
    %c0_0 = arith.constant 0 : index
    %0 = vector.load %arg1[%c0, %c0_0] : memref<8x32xf32, #tpu.memory_space<vmem>>, vector<8x32xf32>
    %c0_1 = arith.constant 0 : index
    %c0_2 = arith.constant 0 : index
    %1 = vector.load %arg2[%c0_1, %c0_2] : memref<8x1xi32, #tpu.memory_space<vmem>>, vector<8x1xi32>
    %cst = arith.constant dense<0xFF800000> : vector<8xf32>
    %2 = vector.multi_reduction <maximumf>, %0, %cst [1] : vector<8x32xf32> to vector<8xf32>
    %3 = vector.shape_cast %2 : vector<8xf32> to vector<8x1xf32>
    %4 = vector.broadcast %3 : vector<8x1xf32> to vector<8x32xf32>
    %5 = arith.subf %0, %4 : vector<8x32xf32>
    %6 = math.exp %5 : vector<8x32xf32>
    %cst_3 = arith.constant dense<0.000000e+00> : vector<8xf32>
    %7 = vector.multi_reduction <add>, %6, %cst_3 [1] : vector<8x32xf32> to vector<8xf32>
    %8 = vector.shape_cast %7 : vector<8xf32> to vector<8x1xf32>
    %9 = math.log %8 : vector<8x1xf32>
    %10 = arith.addf %3, %9 : vector<8x1xf32>
    %11 = tpu.iota {dimensions = array<i32: 1>} : vector<8x32xi32>
    %12 = vector.broadcast %1 : vector<8x1xi32> to vector<8x32xi32>
    %13 = arith.cmpi eq, %11, %12 : vector<8x32xi32>
    %cst_4 = arith.constant 0.000000e+00 : f32
    %14 = vector.broadcast %cst_4 : f32 to vector<8x32xf32>
    %15 = arith.select %13, %0, %14 : vector<8x32xi1>, vector<8x32xf32>
    %cst_5 = arith.constant dense<0.000000e+00> : vector<8xf32>
    %16 = vector.multi_reduction <add>, %15, %cst_5 [1] : vector<8x32xf32> to vector<8xf32>
    %17 = vector.shape_cast %16 : vector<8xf32> to vector<8x1xf32>
    %18 = arith.subf %10, %17 : vector<8x1xf32>
    %cst_6 = arith.constant 0.000000e+00 : f32
    %19 = vector.broadcast %cst_6 : f32 to vector<8x1xf32>
    %20 = arith.maximumf %18, %19 : vector<8x1xf32>
    %cst_7 = arith.constant 0.000000e+00 : f32
    %21 = vector.broadcast %cst_7 : f32 to vector<8x1xf32>
    %22 = arith.subf %21, %20 : vector<8x1xf32>
    %23 = math.exp %22 : vector<8x1xf32>
    %cst_8 = arith.constant 1.000000e+00 : f32
    %24 = vector.broadcast %cst_8 : f32 to vector<8x1xf32>
    %25 = arith.subf %24, %23 : vector<8x1xf32>
    %cst_9 = arith.constant 0.000000e+00 : f32
    %26 = vector.broadcast %cst_9 : f32 to vector<8x1xf32>
    %27 = arith.maximumf %25, %26 : vector<8x1xf32>
    %28 = arith.mulf %27, %27 : vector<8x1xf32>
    %29 = arith.mulf %28, %20 : vector<8x1xf32>
    %c0_10 = arith.constant 0 : index
    %c0_11 = arith.constant 0 : index
    %30 = vector.load %arg3[%c0_10, %c0_11] : memref<8x1xf32, #tpu.memory_space<vmem>>, vector<8x1xf32>
    tpu.vector_store %arg3[%c0_10, %c0_11], %29 {strides = array<i32>} : memref<8x1xf32, #tpu.memory_space<vmem>>, vector<8x1xf32>,
    return
  }
  func.func @transform_0(%arg0: i32) -> (i32, i32) {
    %c0_i32 = arith.constant 0 : i32
    %c0_i32_0 = arith.constant 0 : i32
    return %arg0, %c0_i32 : i32, i32
  }
  func.func @transform_1(%arg0: i32) -> (i32, i32) {
    %c0_i32 = arith.constant 0 : i32
    %c0_i32_0 = arith.constant 0 : i32
    return %arg0, %c0_i32 : i32, i32
  }
  func.func @transform_2(%arg0: i32) -> (i32, i32) {
    %c0_i32 = arith.constant 0 : i32
    %c0_i32_0 = arith.constant 0 : i32
    return %arg0, %c0_i32 : i32, i32
  }
}

</mosaic_0001>

<llo_original>
// kernel: tpu_custom_call.1
$region0: #{tpu_custom_call.1}
  #allocation0 [shape = 'u32[]', space=smem, size = 0x4, offset = 0x4, fixed_abs, tag = 'smem constant byte address 0x4 - core index']
  #allocation1 [shape = 'u32[144,128]{1,0:T(1,128)}', space=vmem, size = 0x12000, scoped, tag = 'internal scratch']
  %s0 = inlined_call_operand.vmem [shape: f32[8,32], index: 0, kind: input, shape index: {}]
  %s1 = inlined_call_operand.vmem [shape: s32[8,1], index: 1, kind: input, shape index: {}]
  %s2 = inlined_call_operand.vmem [shape: f32[8,1], index: 2, kind: output, shape index: {}]
  %s3 = sld [smem:[#allocation0]]
  $region18: #{tpu_custom_call.1} parent=0
    _
  %s5 = ssub.s32 1, %s3
  %s6 = scalar_select 0, %s5, %s3
  // Predicated region
  $region2: #{tpu_custom_call.1} parent=0 // pred_check
    _
  $region3: #{tpu_custom_call.1} parent=0 // pred_check_branch
    %8 = sbr.rel (0) target = $region5
  $region4: #{tpu_custom_call.1} parent=0 // pred_region
    _
  $region5: #{tpu_custom_call.1} parent=0 // pred_fallthru
    _
  // Predicated region
  $region6: #{tpu_custom_call.1} parent=0 // pred_check
    _
  $region7: #{tpu_custom_call.1} parent=0 // pred_check_branch
    %10 = sbr.rel (0) target = $region9
  $region8: #{tpu_custom_call.1} parent=0 // pred_region
    _
  $region9: #{tpu_custom_call.1} parent=0 // pred_fallthru
    _
  %v11 = vld [vmem:[%s0] sm:$0xff]
  %v12 = vld [vmem:[%s1] sm:$0xff]
  %vm13 = vcmask 261120
  %v14 = vsel %vm13, %v11, -inf
  %15 = vmax.xlane.f32.xlu0 %v14
  %v16 = vpop.xlane.xlu0 %15
  %v17 = vsub.f32 %v11, %v16
  %v18 = vmul.f32 %v17, 1.442695
  %v19 = vpow.pop %v18
  %v20 = vsel %vm13, %v19, 0.0
  %21 = vadd.xlane.f32.xlu0 %v20
  %v22 = vpop.xlane.xlu0 %21
  %v23 = vlog2.pop %v22
  %v24 = vmul.f32 %v23, 0.6931472
  %v25 = vadd.f32 %v16, %v24
  %v26 = vlaneseq
  %v27 = vand.u32 %v26, 127
  %28 = vset.pattern.permute.xlu0 0
  %29 = vperm.xlu0 %28, %v12
  %v30 = vpop.permute.xlu0 %29
  %vm31 = vcmp.eq.s32.totalorder %v27, %v30
  %v32 = vsel %vm31, %v11, 0.0
  %v33 = vsel %vm13, %v32, 0.0
  %34 = vadd.xlane.f32.xlu0 %v33
  %v35 = vpop.xlane.xlu0 %34
  %v36 = vsub.f32 %v25, %v35
  %v37 = vmax.f32 %v36, 0.0
  %v38 = vsub.f32 0.0, %v37
  %v39 = vmul.f32 %v38, 1.442695
  %v40 = vpow.pop %v39
  %v41 = vsub.f32 1.0, %v40
  %v42 = vmax.f32 %v41, 0.0
  %v43 = vmul.f32 %v42, %v42
  %v44 = vmul.f32 %v43, %v37
  %vm45 = vcmask 7168
  %46 = vst.msk [vmem:[%s2] sm:$0xff] %vm45, %v44
  // Predicated region
  $region10: #{tpu_custom_call.1} parent=0 // pred_check
    _
  $region11: #{tpu_custom_call.1} parent=0 // pred_check_branch
    %48 = sbr.rel (0) target = $region13
  $region12: #{tpu_custom_call.1} parent=0 // pred_region
    _
  $region13: #{tpu_custom_call.1} parent=0 // pred_fallthru
    _
  // Predicated region
  $region14: #{tpu_custom_call.1} parent=0 // pred_check
    _
  $region15: #{tpu_custom_call.1} parent=0 // pred_check_branch
    %50 = sbr.rel (0) target = $region17
  $region16: #{tpu_custom_call.1} parent=0 // pred_region
    _
  $region17: #{tpu_custom_call.1} parent=0 // pred_fallthru
    _

</llo_original>
